<compile_context>
chip_gen: v6e
topology: v6e:2x2x1
jax: 0.10.0
libtpu: 0.0.40
codegen_flags: <defaults>
</compile_context>

<pallas_src>
import functools

import jax
import jax.numpy as jnp
from jax.experimental import pallas as pl
from jax.experimental.pallas import tpu as pltpu

DILATIONS = (1, 4, 8)


# ----------------------------------------------------------------------------
# Fused kernel: per (batch, spatial-tile) block
#   p_ref : (1, 27C, T)  im2col patches  (dilation-major, tap, cin)
#   x_ref : (1,  C,  T)  residual input  (NCHW flattened -> lane = spatial)
#   w3_ref: (3, 3C, 9C)  folded 3x3 conv weights (rows = (branch, cout))
#   w1_ref: (3,  C, 3C)  folded 1x1 conv weights (cols = (branch, cin))
#   o_ref : (1,  C,  T)
# ----------------------------------------------------------------------------
def _racp_fused_kernel(p_ref, x_ref, w3_ref, w1_ref, o_ref, *, C):
    p = p_ref[...][0]                     # (27C, T)
    x = x_ref[...][0]                     # (C, T)
    w3 = w3_ref[...]                      # (3, 3C, 9C)
    w1 = w1_ref[...]                      # (3, C, 3C)

    acc = x.astype(jnp.float32)           # residual
    for d in range(w3_ref.shape[0]):      # static unroll over the 3 dilations
        # sublane-aligned static slice of the patch slab for this dilation
        pd = p[d * 9 * C:(d + 1) * 9 * C, :]                                # (9C, T)
        # all 3 branches of this dilation in one K=9C matmul
        z = jnp.dot(w3[d], pd, preferred_element_type=jnp.float32)          # (3C, T)
        y = jnp.where(z > 0, z, 0.1 * z)                                    # LeakyReLU(0.1)
        # 1x1 combine for this dilation's slice of the channel concat
        acc = acc + jnp.dot(w1[d], y, preferred_element_type=jnp.float32)   # (C, T)

    o_ref[...] = acc[None].astype(o_ref.dtype)


# ----------------------------------------------------------------------------
# Wrapper glue (runs in XLA, outside the hot kernel)
# ----------------------------------------------------------------------------
def _build_patches(x_nchw, dilations):
    """im2col slab (B, 27*C, H*W): one dmax-padded copy of x, 27 shifted windows."""
    B, C, H, W = x_nchw.shape
    dmax = max(dilations)
    xp = jnp.pad(x_nchw, ((0, 0), (0, 0), (dmax, dmax), (dmax, dmax)))
    wins = []
    for d in dilations:
        off = dmax - d
        for ky in range(3):
            for kx in range(3):
                wins.append(xp[:, :,
                               off + ky * d: off + ky * d + H,
                               off + kx * d: off + kx * d + W])
    return jnp.concatenate(wins, axis=1).reshape(B, len(dilations) * 9 * C, H * W)


def _pick_spatial_tile(hw, c, max_bytes=2 * 1024 * 1024):
    """Largest lane tile T | H*W with T % 128 == 0 and patch block <= max_bytes."""
    cap = max(128, ((max_bytes // (27 * c * 4)) // 128) * 128)
    if hw <= cap or hw % 128 != 0:
        return hw                     # block last dim must be %128 or the full dim
    t = min(cap, (hw // 128) * 128)
    while t >= 128:
        if hw % t == 0:
            return t
        t -= 128
    return hw


def prepare_params(w3_oihw, w1_oihw):
    """Fold PyTorch weights once (outside the per-forward path).

    w3_oihw: (3 branches, 3 taps, Cout, Cin, 3, 3)   -- conv{i}_{j}.weight (OIHW)
    w1_oihw: (3 branches, Cout, 3*Cin, 1, 1)         -- conv{i}.weight     (OIHW)
    Returns:
      w3: (3 taps, 3*Cout, 9*Cin)  rows=(branch, cout), cols=(ky, kx, cin)
      w1: (3 taps, Cout,  3*Cin)   cols=(branch, cin)
    """
    nb, nt, co, ci, kh, kw = w3_oihw.shape
    w3 = jnp.transpose(w3_oihw, (1, 0, 2, 4, 5, 3)).reshape(nt, nb * co, kh * kw * ci)
    w1 = w1_oihw[..., 0, 0].reshape(nb, co, nt, ci)          # (br, cout, tap, cin)
    w1 = jnp.transpose(w1, (2, 1, 0, 3)).reshape(nt, co, nb * ci)
    return w3, w1


def init_params(key, ch_in, ch_out):
    """Synthetic weights in the PyTorch (OIHW) shapes."""
    k3, k1 = jax.random.split(key)
    w3_oihw = 0.05 * jax.random.normal(k3, (3, 3, ch_in, ch_in, 3, 3), jnp.float32)
    w1_oihw = 0.05 * jax.random.normal(k1, (3, ch_out, 3 * ch_in, 1, 1), jnp.float32)
    return w3_oihw, w1_oihw


def racp_block_1(x_nchw, w3_packed, w1_packed, dilations=DILATIONS):
    """Forward pass. x_nchw: (B, C, H, W) float32. Returns (B, C, H, W)."""
    B, C, H, W = x_nchw.shape
    # Residual add requires ch_out == ch_in (as in the PyTorch forward).
    assert w1_packed.shape[1] == C, "RACP_block_1 residual requires ch_out == ch_in"
    nd = len(dilations)
    HW = H * W
    T = _pick_spatial_tile(HW, C)

    patches = _build_patches(x_nchw, dilations)      # (B, 27C, HW), lane-dense
    x2 = x_nchw.reshape(B, C, HW)                    # free reshape, stays NCHW

    kernel = functools.partial(_racp_fused_kernel, C=C)
    out = pl.pallas_call(
        kernel,
        out_shape=jax.ShapeDtypeStruct((B, C, HW), x_nchw.dtype),
        grid=(B, HW // T),
        in_specs=[
            pl.BlockSpec((1, nd * 9 * C, T), lambda b, s: (b, 0, s)),   # patches
            pl.BlockSpec((1, C, T), lambda b, s: (b, 0, s)),            # residual x
            pl.BlockSpec((nd, 3 * C, 9 * C), lambda b, s: (0, 0, 0)),   # w3 (full)
            pl.BlockSpec((nd, C, 3 * C), lambda b, s: (0, 0, 0)),       # w1 (full)
        ],
        out_specs=pl.BlockSpec((1, C, T), lambda b, s: (b, 0, s)),
        compiler_params=pltpu.CompilerParams(
            dimension_semantics=("parallel", "parallel"),
            vmem_limit_bytes=48 * 1024 * 1024),
    )(patches, x2, w3_packed, w1_packed)
    return out.reshape(B, C, H, W)


# ----------------------------------------------------------------------------
# Pure-JAX reference (for correctness check), consumes the raw OIHW weights
# ----------------------------------------------------------------------------
def _ref_forward(x, w3_oihw, w1_oihw, dilations=DILATIONS):
    out = x
    for br in range(3):
        ys = []
        for t, d in enumerate(dilations):
            y = jax.lax.conv_general_dilated(
                x, w3_oihw[br, t], window_strides=(1, 1),
                padding=[(d, d), (d, d)], rhs_dilation=(d, d),
                dimension_numbers=("NCHW", "OIHW", "NCHW"))
            ys.append(jnp.where(y > 0, y, 0.1 * y))
        cat = jnp.concatenate(ys, axis=1)
        out = out + jax.lax.conv_general_dilated(
            cat, w1_oihw[br], window_strides=(1, 1), padding=[(0, 0), (0, 0)],
            dimension_numbers=("NCHW", "OIHW", "NCHW"))
    return out


if __name__ == "__main__":
    B, C, H, W = 2, 8, 16, 16   # ch_in == ch_out == 8 (residual add requires this)
    key = jax.random.PRNGKey(0)
    kx_, kp_ = jax.random.split(key)
    x = jax.random.normal(kx_, (B, C, H, W), jnp.float32)

    w3_oihw, w1_oihw = init_params(kp_, C, C)
    w3_packed, w1_packed = prepare_params(w3_oihw, w1_oihw)   # one-time weight fold

    fwd = jax.jit(racp_block_1)
    out = jax.block_until_ready(fwd(x, w3_packed, w1_packed))

    ref = jax.block_until_ready(_ref_forward(x, w3_oihw, w1_oihw))
    assert out.shape == (B, C, H, W)
    max_err = float(jnp.max(jnp.abs(out - ref)))
    assert jnp.allclose(out, ref, atol=1e-3, rtol=1e-3), max_err

    print("KERNEL_OK")
</pallas_src>

<mosaic_0001>
module attributes {stable_mosaic.version = 11 : i64} {
  func.func @_racp_fused_kernel(%arg0: i32, %arg1: i32, %arg2: memref<1x216x256xf32, #tpu.memory_space<vmem>>, %arg3: memref<1x8x256xf32, #tpu.memory_space<vmem>>, %arg4: memref<3x24x72xf32, #tpu.memory_space<vmem>>, %arg5: memref<3x8x24xf32, #tpu.memory_space<vmem>>, %arg6: memref<1x8x256xf32, #tpu.memory_space<vmem>>) attributes {dimension_semantics = [#tpu.dimension_semantics<parallel>, #tpu.dimension_semantics<parallel>], iteration_bounds = array<i64: 2, 1>, scalar_prefetch = 0 : i64, scratch_operands = 0 : i64, tpu.core_type = #tpu.core_type<tc>, window_params = [{transform_indices = @transform_0, window_bounds = array<i64: 1, 216, 256>}, {transform_indices = @transform_1, window_bounds = array<i64: 1, 8, 256>}, {pipeline_mode = #tpu.pipeline_mode<synchronous>, transform_indices = @transform_2, window_bounds = array<i64: 3, 24, 72>}, {pipeline_mode = #tpu.pipeline_mode<synchronous>, transform_indices = @transform_3, window_bounds = array<i64: 3, 8, 24>}, {transform_indices = @transform_4, window_bounds = array<i64: 1, 8, 256>}]} {
    %c0 = arith.constant 0 : index
    %c0_0 = arith.constant 0 : index
    %c0_1 = arith.constant 0 : index
    %0 = vector.load %arg2[%c0, %c0_0, %c0_1] : memref<1x216x256xf32, #tpu.memory_space<vmem>>, vector<1x216x256xf32>
    %1 = vector.shape_cast %0 : vector<1x216x256xf32> to vector<216x256xf32>
    %c0_2 = arith.constant 0 : index
    %c0_3 = arith.constant 0 : index
    %c0_4 = arith.constant 0 : index
    %2 = vector.load %arg3[%c0_2, %c0_3, %c0_4] : memref<1x8x256xf32, #tpu.memory_space<vmem>>, vector<1x8x256xf32>
    %3 = vector.shape_cast %2 : vector<1x8x256xf32> to vector<8x256xf32>
    %c0_5 = arith.constant 0 : index
    %c0_6 = arith.constant 0 : index
    %c0_7 = arith.constant 0 : index
    %4 = vector.load %arg4[%c0_5, %c0_6, %c0_7] : memref<3x24x72xf32, #tpu.memory_space<vmem>>, vector<3x24x72xf32>
    %c0_8 = arith.constant 0 : index
    %c0_9 = arith.constant 0 : index
    %c0_10 = arith.constant 0 : index
    %5 = vector.load %arg5[%c0_8, %c0_9, %c0_10] : memref<3x8x24xf32, #tpu.memory_space<vmem>>, vector<3x8x24xf32>
    %6 = vector.extract_strided_slice %1 {offsets = [0, 0], sizes = [72, 256], strides = [1, 1]} : vector<216x256xf32> to vector<72x256xf32>
    %7 = vector.extract_strided_slice %4 {offsets = [0, 0, 0], sizes = [1, 24, 72], strides = [1, 1, 1]} : vector<3x24x72xf32> to vector<1x24x72xf32>
    %8 = vector.shape_cast %7 : vector<1x24x72xf32> to vector<24x72xf32>
    %cst = arith.constant dense<0.000000e+00> : vector<24x256xf32>
    %9 = tpu.matmul %8, %6, %cst {dimension_numbers = #tpu.dot_dimension_numbers<[1], [0], [0], [1], [0, 0, 1, 1], [], []>} : vector<24x72xf32>, vector<72x256xf32>, vector<24x256xf32> -> vector<24x256xf32>
    %cst_11 = arith.constant 0.000000e+00 : f32
    %10 = vector.broadcast %cst_11 : f32 to vector<24x256xf32>
    %11 = arith.cmpf ogt, %9, %10 : vector<24x256xf32>
    %cst_12 = arith.constant 1.000000e-01 : f32
    %12 = vector.broadcast %cst_12 : f32 to vector<24x256xf32>
    %13 = arith.mulf %12, %9 : vector<24x256xf32>
    %14 = arith.select %11, %9, %13 : vector<24x256xi1>, vector<24x256xf32>
    %15 = vector.extract_strided_slice %5 {offsets = [0, 0, 0], sizes = [1, 8, 24], strides = [1, 1, 1]} : vector<3x8x24xf32> to vector<1x8x24xf32>
    %16 = vector.shape_cast %15 : vector<1x8x24xf32> to vector<8x24xf32>
    %cst_13 = arith.constant dense<0.000000e+00> : vector<8x256xf32>
    %17 = tpu.matmul %16, %14, %cst_13 {dimension_numbers = #tpu.dot_dimension_numbers<[1], [0], [0], [1], [0, 0, 1, 1], [], []>} : vector<8x24xf32>, vector<24x256xf32>, vector<8x256xf32> -> vector<8x256xf32>
    %18 = arith.addf %3, %17 : vector<8x256xf32>
    %19 = vector.extract_strided_slice %1 {offsets = [72, 0], sizes = [72, 256], strides = [1, 1]} : vector<216x256xf32> to vector<72x256xf32>
    %20 = vector.extract_strided_slice %4 {offsets = [1, 0, 0], sizes = [1, 24, 72], strides = [1, 1, 1]} : vector<3x24x72xf32> to vector<1x24x72xf32>
    %21 = vector.shape_cast %20 : vector<1x24x72xf32> to vector<24x72xf32>
    %cst_14 = arith.constant dense<0.000000e+00> : vector<24x256xf32>
    %22 = tpu.matmul %21, %19, %cst_14 {dimension_numbers = #tpu.dot_dimension_numbers<[1], [0], [0], [1], [0, 0, 1, 1], [], []>} : vector<24x72xf32>, vector<72x256xf32>, vector<24x256xf32> -> vector<24x256xf32>
    %cst_15 = arith.constant 0.000000e+00 : f32
    %23 = vector.broadcast %cst_15 : f32 to vector<24x256xf32>
    %24 = arith.cmpf ogt, %22, %23 : vector<24x256xf32>
    %cst_16 = arith.constant 1.000000e-01 : f32
    %25 = vector.broadcast %cst_16 : f32 to vector<24x256xf32>
    %26 = arith.mulf %25, %22 : vector<24x256xf32>
    %27 = arith.select %24, %22, %26 : vector<24x256xi1>, vector<24x256xf32>
    %28 = vector.extract_strided_slice %5 {offsets = [1, 0, 0], sizes = [1, 8, 24], strides = [1, 1, 1]} : vector<3x8x24xf32> to vector<1x8x24xf32>
    %29 = vector.shape_cast %28 : vector<1x8x24xf32> to vector<8x24xf32>
    %cst_17 = arith.constant dense<0.000000e+00> : vector<8x256xf32>
    %30 = tpu.matmul %29, %27, %cst_17 {dimension_numbers = #tpu.dot_dimension_numbers<[1], [0], [0], [1], [0, 0, 1, 1], [], []>} : vector<8x24xf32>, vector<24x256xf32>, vector<8x256xf32> -> vector<8x256xf32>
    %31 = arith.addf %18, %30 : vector<8x256xf32>
    %32 = vector.extract_strided_slice %1 {offsets = [144, 0], sizes = [72, 256], strides = [1, 1]} : vector<216x256xf32> to vector<72x256xf32>
    %33 = vector.extract_strided_slice %4 {offsets = [2, 0, 0], sizes = [1, 24, 72], strides = [1, 1, 1]} : vector<3x24x72xf32> to vector<1x24x72xf32>
    %34 = vector.shape_cast %33 : vector<1x24x72xf32> to vector<24x72xf32>
    %cst_18 = arith.constant dense<0.000000e+00> : vector<24x256xf32>
    %35 = tpu.matmul %34, %32, %cst_18 {dimension_numbers = #tpu.dot_dimension_numbers<[1], [0], [0], [1], [0, 0, 1, 1], [], []>} : vector<24x72xf32>, vector<72x256xf32>, vector<24x256xf32> -> vector<24x256xf32>
    %cst_19 = arith.constant 0.000000e+00 : f32
    %36 = vector.broadcast %cst_19 : f32 to vector<24x256xf32>
    %37 = arith.cmpf ogt, %35, %36 : vector<24x256xf32>
    %cst_20 = arith.constant 1.000000e-01 : f32
    %38 = vector.broadcast %cst_20 : f32 to vector<24x256xf32>
    %39 = arith.mulf %38, %35 : vector<24x256xf32>
    %40 = arith.select %37, %35, %39 : vector<24x256xi1>, vector<24x256xf32>
    %41 = vector.extract_strided_slice %5 {offsets = [2, 0, 0], sizes = [1, 8, 24], strides = [1, 1, 1]} : vector<3x8x24xf32> to vector<1x8x24xf32>
    %42 = vector.shape_cast %41 : vector<1x8x24xf32> to vector<8x24xf32>
    %cst_21 = arith.constant dense<0.000000e+00> : vector<8x256xf32>
    %43 = tpu.matmul %42, %40, %cst_21 {dimension_numbers = #tpu.dot_dimension_numbers<[1], [0], [0], [1], [0, 0, 1, 1], [], []>} : vector<8x24xf32>, vector<24x256xf32>, vector<8x256xf32> -> vector<8x256xf32>
    %44 = arith.addf %31, %43 : vector<8x256xf32>
    %45 = vector.shape_cast %44 : vector<8x256xf32> to vector<1x8x256xf32>
    %c0_22 = arith.constant 0 : index
    %c0_23 = arith.constant 0 : index
    %c0_24 = arith.constant 0 : index
    %46 = vector.load %arg6[%c0_22, %c0_23, %c0_24] : memref<1x8x256xf32, #tpu.memory_space<vmem>>, vector<1x8x256xf32>
    tpu.vector_store %arg6[%c0_22, %c0_23, %c0_24], %45 {strides = array<i32>} : memref<1x8x256xf32, #tpu.memory_space<vmem>>, vector<1x8x256xf32>,
    return
  }
  func.func @transform_0(%arg0: i32, %arg1: i32) -> (i32, i32, i32) {
    %c0_i32 = arith.constant 0 : i32
    %c0_i32_0 = arith.constant 0 : i32
    return %arg0, %c0_i32, %arg1 : i32, i32, i32
  }
  func.func @transform_1(%arg0: i32, %arg1: i32) -> (i32, i32, i32) {
    %c0_i32 = arith.constant 0 : i32
    %c0_i32_0 = arith.constant 0 : i32
    return %arg0, %c0_i32, %arg1 : i32, i32, i32
  }
  func.func @transform_2(%arg0: i32, %arg1: i32) -> (i32, i32, i32) {
    %c0_i32 = arith.constant 0 : i32
    %c0_i32_0 = arith.constant 0 : i32
    %c0_i32_1 = arith.constant 0 : i32
    %c0_i32_2 = arith.constant 0 : i32
    return %c0_i32, %c0_i32_0, %c0_i32_1 : i32, i32, i32
  }
  func.func @transform_3(%arg0: i32, %arg1: i32) -> (i32, i32, i32) {
    %c0_i32 = arith.constant 0 : i32
    %c0_i32_0 = arith.constant 0 : i32
    %c0_i32_1 = arith.constant 0 : i32
    %c0_i32_2 = arith.constant 0 : i32
    return %c0_i32, %c0_i32_0, %c0_i32_1 : i32, i32, i32
  }
  func.func @transform_4(%arg0: i32, %arg1: i32) -> (i32, i32, i32) {
    %c0_i32 = arith.constant 0 : i32
    %c0_i32_0 = arith.constant 0 : i32
    return %arg0, %c0_i32, %arg1 : i32, i32, i32
  }
}

</mosaic_0001>

<llo_original>
// kernel: racp_block_1.1
$region0: #{racp_block_1.1}
  #allocation0 [shape = 'u32[]', space=smem, size = 0x4, offset = 0x4, fixed_abs, tag = 'smem constant byte address 0x4 - core index']
  #allocation1 [shape = 'u32[144,128]{1,0:T(1,128)}', space=vmem, size = 0x12000, scoped, tag = 'internal scratch']
  %s0 = inlined_call_operand.vmem [shape: f32[2,216,256], index: 0, kind: input, shape index: {}]
  %s1 = inlined_call_operand.vmem [shape: f32[2,8,256], index: 1, kind: input, shape index: {}]
  %s2 = inlined_call_operand.vmem [shape: f32[3,24,72], index: 2, kind: input, shape index: {}]
  %s3 = inlined_call_operand.vmem [shape: f32[3,8,24], index: 3, kind: input, shape index: {}]
  %s4 = inlined_call_operand.vmem [shape: f32[2,8,256], index: 4, kind: output, shape index: {}]
  %s5 = sld [smem:[#allocation0]]
  $region49: #{racp_block_1.1} parent=0
    _
  %s7 = ssub.s32 1, %s5
  %s8 = scalar_select 0, %s7, %s5
  loop: start=0, step=1, limit=4
  $region2: #{racp_block_1.1} parent=0 // loop_pre_header
    _
  $region3: #{racp_block_1.1} parent=0 // loop_header
    %s10 = sphi 0, %s14
    %p11 = scmp.ge.s32.totalorder %s10, 4
    %s17 = sphi 0, %s29
    %s18 = sphi 0, %s25
    %s19 = sphi 0, %s17
    %s20 = sphi 0, %s18
    %s21 = sphi 0, %s19
    %s22 = sphi 0, %s20
    %s34 = sphi 0, %s36
    %s37 = sphi 0, %s34
    %s38 = sphi 0, %s37
    %s54 = sphi 0, %s38
    %s62 = sphi 0, %s64
    %s65 = sphi 0, %s62
    %s66 = sphi 0, %s65
    %s82 = sphi 0, %s66
    %s86 = sphi 0, %s86
    %s88 = sphi 0, %s86
    %s89 = sphi 0, %s88
    %s103 = sphi 0, %s89
    %s107 = sphi 0, %s107
    %s109 = sphi 0, %s107
    %s110 = sphi 0, %s109
    %s124 = sphi 0, %s110
    %s132 = sphi 0, %s134
    %s135 = sphi 0, %s132
    %s136 = sphi 0, %s135
    %s152 = sphi 0, %s136
  $region4: #{racp_block_1.1} parent=0 // loop_header_branch
    %13 = sbr.rel (%p11) target = $region8
  $region5: #{racp_block_1.1} parent=0 // loop_body
    %s15 = ssub.s32 %s10, 1
    %s16 = ssub.s32 %s10, 2
    %s23 = sadd.s32 1, %s18
    %p24 = scmp.ge.s32.totalorder %s23, 1
    %s25 = scalar_select %p24, 0, %s23
    %s26 = sadd.s32 1, %s17
    %s27 = scalar_select %p24, %s26, %s17
    %p28 = scmp.ge.s32.totalorder %s27, 2
    %s29 = scalar_select %p28, 0, %s27
    %s30 = ssub.s32 %s17, %s29
    %s31 = ssub.s32 %s18, %s25
    %s32 = sor.u32 %s30, %s31
    %p33 = scmp.eq.s32.totalorder %s32, 0
    %s35 = sadd.s32 %s34, 1
    %s36 = scalar_select %p33, %s34, %s35
    %p39 = pneg %p33
    %p40 = scmp.eq.s32.totalorder %s10, 1
    %p41 = por %p39, %p40
    %p42 = scmp.ne.s32.totalorder %s34, %s37
    %p43 = scmp.eq.s32.totalorder %s10, 0
    %p44 = por %p42, %p43
    %p45 = scmp.ne.s32.totalorder %s34, %s37
    %p46 = scmp.eq.s32.totalorder %s15, 1
    %p47 = por %p45, %p46
    %p48 = scmp.ne.s32.totalorder %s37, %s38
    %p49 = scmp.eq.s32.totalorder %s15, 0
    %p50 = por %p48, %p49
    %p51 = scmp.ne.s32.totalorder %s37, %s38
    %p52 = scmp.eq.s32.totalorder %s16, 1
    %p53 = por %p51, %p52
    %p55 = scmp.ne.s32.totalorder %s38, %s54
    %p56 = scmp.eq.s32.totalorder %s16, 0
    %p57 = por %p55, %p56
    %s58 = ssub.s32 %s17, %s29
    %s59 = ssub.s32 %s18, %s25
    %s60 = sor.u32 %s58, %s59
    %p61 = scmp.eq.s32.totalorder %s60, 0
    %s63 = sadd.s32 %s62, 1
    %s64 = scalar_select %p61, %s62, %s63
    %p67 = pneg %p61
    %p68 = scmp.eq.s32.totalorder %s10, 1
    %p69 = por %p67, %p68
    %p70 = scmp.ne.s32.totalorder %s62, %s65
    %p71 = scmp.eq.s32.totalorder %s10, 0
    %p72 = por %p70, %p71
    %p73 = scmp.ne.s32.totalorder %s62, %s65
    %p74 = scmp.eq.s32.totalorder %s15, 1
    %p75 = por %p73, %p74
    %p76 = scmp.ne.s32.totalorder %s65, %s66
    %p77 = scmp.eq.s32.totalorder %s15, 0
    %p78 = por %p76, %p77
    %p79 = scmp.ne.s32.totalorder %s65, %s66
    %p80 = scmp.eq.s32.totalorder %s16, 1
    %p81 = por %p79, %p80
    %p83 = scmp.ne.s32.totalorder %s66, %s82
    %p84 = scmp.eq.s32.totalorder %s16, 0
    %p85 = por %p83, %p84
    %s87 = sadd.s32 %s86, 1
    %p90 = scmp.eq.s32.totalorder %s10, 1
    %p91 = scmp.ne.s32.totalorder %s86, %s88
    %p92 = scmp.eq.s32.totalorder %s10, 0
    %p93 = por %p91, %p92
    %p94 = scmp.ne.s32.totalorder %s86, %s88
    %p95 = scmp.eq.s32.totalorder %s15, 1
    %p96 = por %p94, %p95
    %p97 = scmp.ne.s32.totalorder %s88, %s89
    %p98 = scmp.eq.s32.totalorder %s15, 0
    %p99 = por %p97, %p98
    %p100 = scmp.ne.s32.totalorder %s88, %s89
    %p101 = scmp.eq.s32.totalorder %s16, 1
    %p102 = por %p100, %p101
    %p104 = scmp.ne.s32.totalorder %s89, %s103
    %p105 = scmp.eq.s32.totalorder %s16, 0
    %p106 = por %p104, %p105
    %s108 = sadd.s32 %s107, 1
    %p111 = scmp.eq.s32.totalorder %s10, 1
    %p112 = scmp.ne.s32.totalorder %s107, %s109
    %p113 = scmp.eq.s32.totalorder %s10, 0
    %p114 = por %p112, %p113
    %p115 = scmp.ne.s32.totalorder %s107, %s109
    %p116 = scmp.eq.s32.totalorder %s15, 1
    %p117 = por %p115, %p116
    %p118 = scmp.ne.s32.totalorder %s109, %s110
    %p119 = scmp.eq.s32.totalorder %s15, 0
    %p120 = por %p118, %p119
    %p121 = scmp.ne.s32.totalorder %s109, %s110
    %p122 = scmp.eq.s32.totalorder %s16, 1
    %p123 = por %p121, %p122
    %p125 = scmp.ne.s32.totalorder %s110, %s124
    %p126 = scmp.eq.s32.totalorder %s16, 0
    %p127 = por %p125, %p126
    %s128 = ssub.s32 %s17, %s29
    %s129 = ssub.s32 %s18, %s25
    %s130 = sor.u32 %s128, %s129
    %p131 = scmp.eq.s32.totalorder %s130, 0
    %s133 = sadd.s32 %s132, 1
    %s134 = scalar_select %p131, %s132, %s133
    %p137 = pneg %p131
    %p138 = scmp.eq.s32.totalorder %s10, 1
    %p139 = por %p137, %p138
    %p140 = scmp.ne.s32.totalorder %s132, %s135
    %p141 = scmp.eq.s32.totalorder %s10, 0
    %p142 = por %p140, %p141
    %p143 = scmp.ne.s32.totalorder %s132, %s135
    %p144 = scmp.eq.s32.totalorder %s15, 1
    %p145 = por %p143, %p144
    %p146 = scmp.ne.s32.totalorder %s135, %s136
    %p147 = scmp.eq.s32.totalorder %s15, 0
    %p148 = por %p146, %p147
    %p149 = scmp.ne.s32.totalorder %s135, %s136
    %p150 = scmp.eq.s32.totalorder %s16, 1
    %p151 = por %p149, %p150
    %p153 = scmp.ne.s32.totalorder %s136, %s152
    %p154 = scmp.eq.s32.totalorder %s16, 0
    %p155 = por %p153, %p154
    %p156 = scmp.le.s32.totalorder 1, %s10
    %p157 = scmp.lt.s32.totalorder %s10, 3
    %p158 = pnand %p156, %p157
    %p159 = pneg %p158
    // Predicated region
    $region9: #{racp_block_1.1} parent=5 // pred_check
      _
    $region10: #{racp_block_1.1} parent=5 // pred_check_branch
      %161 = sbr.rel (%p158) target = $region12
    $region11: #{racp_block_1.1} parent=5 // pred_region
      %s162 = ssub.s32 %s10, 1
      // Predicated region
      $region13: #{racp_block_1.1} parent=11 // pred_check
        %p163 = pneg %p99
      $region14: #{racp_block_1.1} parent=11 // pred_check_branch
        %165 = sbr.rel (%p163) target = $region16
      $region15: #{racp_block_1.1} parent=11 // pred_region
        _
      $region16: #{racp_block_1.1} parent=11 // pred_fallthru
        _
      // Predicated region
      $region17: #{racp_block_1.1} parent=11 // pred_check
        %p166 = pneg %p120
      $region18: #{racp_block_1.1} parent=11 // pred_check_branch
        %168 = sbr.rel (%p166) target = $region20
      $region19: #{racp_block_1.1} parent=11 // pred_region
        _
      $region20: #{racp_block_1.1} parent=11 // pred_fallthru
        _
    $region12: #{racp_block_1.1} parent=5 // pred_fallthru
      _
    %p169 = scmp.lt.s32.totalorder %s10, 2
    // Predicated region
    $region21: #{racp_block_1.1} parent=5 // pred_check
      %p170 = pneg %p169
    $region22: #{racp_block_1.1} parent=5 // pred_check_branch
      %172 = sbr.rel (%p170) target = $region24
    $region23: #{racp_block_1.1} parent=5 // pred_region
      // Predicated region
      $region25: #{racp_block_1.1} parent=23 // pred_check
        %p173 = pneg %p44
      $region26: #{racp_block_1.1} parent=23 // pred_check_branch
        %175 = sbr.rel (%p173) target = $region28
      $region27: #{racp_block_1.1} parent=23 // pred_region
        %s176 = smul.u32 2, %s18
        %p177 = scmp.lt.s32.totalorder %s17, 1
        %s178 = scalar_select %p177, %s17, 1
        %p179 = scmp.lt.s32.totalorder %s176, 1
        %s180 = scalar_select %p179, %s176, 1
        %s181 = smul.addr %s178, 54
        %s182 = sadd.s32 %s180, %s181
        %s183 = smul.addr %s182, 8
        %s184 = scalar_lea.vmem %s0, %s183
        %s185 = smul.u32 2, %s18
      $region28: #{racp_block_1.1} parent=23 // pred_fallthru
        _
      // Predicated region
      $region29: #{racp_block_1.1} parent=23 // pred_check
        %p186 = pneg %p72
      $region30: #{racp_block_1.1} parent=23 // pred_check_branch
        %188 = sbr.rel (%p186) target = $region32
      $region31: #{racp_block_1.1} parent=23 // pred_region
        %s189 = smul.u32 2, %s18
        %p190 = scmp.lt.s32.totalorder %s17, 1
        %s191 = scalar_select %p190, %s17, 1
        %p192 = scmp.lt.s32.totalorder %s189, 1
        %s193 = scalar_select %p192, %s189, 1
        %s194 = smul.addr %s191, 2
        %s195 = sadd.s32 %s193, %s194
        %s196 = smul.addr %s195, 8
        %s197 = scalar_lea.vmem %s1, %s196
        %s198 = smul.u32 2, %s18
      $region32: #{racp_block_1.1} parent=23 // pred_fallthru
        _
    $region24: #{racp_block_1.1} parent=5 // pred_fallthru
      _
    %p199 = scmp.le.s32.totalorder 1, %s10
    %p200 = scmp.lt.s32.totalorder %s10, 3
    %p201 = pnand %p199, %p200
    %p202 = pneg %p201
    // Predicated region
    $region33: #{racp_block_1.1} parent=5 // pred_check
      _
    $region34: #{racp_block_1.1} parent=5 // pred_check_branch
      %204 = sbr.rel (%p201) target = $region36
    $region35: #{racp_block_1.1} parent=5 // pred_region
      %s205 = ssub.s32 %s10, 1
      %s206 = smul.u32 2, %s20
      %p207 = scmp.lt.s32.totalorder %s19, 1
      %s208 = scalar_select %p207, %s19, 1
      %p209 = scmp.lt.s32.totalorder %s206, 1
      %s210 = scalar_select %p209, %s206, 1
      %s211 = smul.addr %s208, 54
      %s212 = sadd.s32 %s210, %s211
      %s213 = smul.addr %s212, 8
      %s214 = scalar_lea.vmem %s0, %s213
      %p215 = pneg %p50
      %p216 = pneg %p47
      %s217 = smul.u32 2, %s20
      %p218 = scmp.lt.s32.totalorder %s19, 1
      %s219 = scalar_select %p218, %s19, 1
      %p220 = scmp.lt.s32.totalorder %s217, 1
      %s221 = scalar_select %p220, %s217, 1
      %s222 = smul.addr %s219, 2
      %s223 = sadd.s32 %s221, %s222
      %s224 = smul.addr %s223, 8
      %s225 = scalar_lea.vmem %s1, %s224
      %p226 = pneg %p78
      %p227 = pneg %p75
      %p228 = pneg %p99
      %p229 = pneg %p96
      %p230 = pneg %p120
      %p231 = pneg %p117
      %p232 = pneg %p148
      %p233 = pneg %p145
      %s234 = smul.u32 2, %s20
      %p235 = scmp.lt.s32.totalorder %s19, 1
      %s236 = scalar_select %p235, %s19, 1
      %p237 = scmp.lt.s32.totalorder %s234, 1
      %s238 = scalar_select %p237, %s234, 1
      %s239 = smul.addr %s236, 2
      %s240 = sadd.s32 %s238, %s239
      %s241 = smul.addr %s240, 8
      %s242 = scalar_lea.vmem %s4, %s241
      %s243 = smul.u32 2, %s20
      %p244 = scmp.lt.s32.totalorder %s19, 1
      %s245 = scalar_select %p244, %s19, 1
      %p246 = scmp.lt.s32.totalorder %s243, 1
      %s247 = scalar_select %p246, %s243, 1
      %s248 = smul.addr %s245, 54
      %s249 = sadd.s32 %s247, %s248
      %s250 = smul.addr %s249, 8
      %s251 = scalar_lea.vmem %s0, %s250
      %s252 = smul.u32 2, %s20
      %s253 = smul.u32 2, %s20
      %p254 = scmp.lt.s32.totalorder %s19, 1
      %s255 = scalar_select %p254, %s19, 1
      %p256 = scmp.lt.s32.totalorder %s253, 1
      %s257 = scalar_select %p256, %s253, 1
      %s258 = smul.addr %s255, 2
      %s259 = sadd.s32 %s257, %s258
      %s260 = smul.addr %s259, 8
      %s261 = scalar_lea.vmem %s1, %s260
      %s262 = smul.u32 2, %s20
      %s263 = smul.u32 2, %s20
      %p264 = scmp.lt.s32.totalorder %s19, 1
      %s265 = scalar_select %p264, %s19, 1
      %p266 = scmp.lt.s32.totalorder %s263, 1
      %s267 = scalar_select %p266, %s263, 1
      %s268 = smul.addr %s265, 2
      %s269 = sadd.s32 %s267, %s268
      %s270 = smul.addr %s269, 8
      %s271 = scalar_lea.vmem %s4, %s270
      %s272 = smul.u32 2, %s20
      %v273 = vld [vmem:[%s251] sm:$0xff]
      %v274 = vld [vmem:[%s251 + $0x8] sm:$0xff]
      %v275 = vld [vmem:[%s251 + $0x10] sm:$0xff]
      %v276 = vld [vmem:[%s251 + $0x18] sm:$0xff]
      %v277 = vld [vmem:[%s251 + $0x20] sm:$0xff]
      %v278 = vld [vmem:[%s251 + $0x28] sm:$0xff]
      %v279 = vld [vmem:[%s251 + $0x30] sm:$0xff]
      %v280 = vld [vmem:[%s251 + $0x38] sm:$0xff]
      %v281 = vld [vmem:[%s251 + $0x40] sm:$0xff]
      %v282 = vld [vmem:[%s251 + $0x48] sm:$0xff]
      %v283 = vld [vmem:[%s251 + $0x50] sm:$0xff]
      %v284 = vld [vmem:[%s251 + $0x58] sm:$0xff]
      %v285 = vld [vmem:[%s251 + $0x60] sm:$0xff]
      %v286 = vld [vmem:[%s251 + $0x68] sm:$0xff]
      %v287 = vld [vmem:[%s251 + $0x70] sm:$0xff]
      %v288 = vld [vmem:[%s251 + $0x78] sm:$0xff]
      %v289 = vld [vmem:[%s251 + $0x80] sm:$0xff]
      %v290 = vld [vmem:[%s251 + $0x88] sm:$0xff]
      %v291 = vld [vmem:[%s251 + $0x90] sm:$0xff]
      %v292 = vld [vmem:[%s251 + $0x98] sm:$0xff]
      %v293 = vld [vmem:[%s251 + $0xa0] sm:$0xff]
      %v294 = vld [vmem:[%s251 + $0xa8] sm:$0xff]
      %v295 = vld [vmem:[%s251 + $0xb0] sm:$0xff]
      %v296 = vld [vmem:[%s251 + $0xb8] sm:$0xff]
      %v297 = vld [vmem:[%s251 + $0xc0] sm:$0xff]
      %v298 = vld [vmem:[%s251 + $0xc8] sm:$0xff]
      %v299 = vld [vmem:[%s251 + $0xd0] sm:$0xff]
      %v300 = vld [vmem:[%s251 + $0xd8] sm:$0xff]
      %v301 = vld [vmem:[%s251 + $0xe0] sm:$0xff]
      %v302 = vld [vmem:[%s251 + $0xe8] sm:$0xff]
      %v303 = vld [vmem:[%s251 + $0xf0] sm:$0xff]
      %v304 = vld [vmem:[%s251 + $0xf8] sm:$0xff]
      %v305 = vld [vmem:[%s251 + $0x100] sm:$0xff]
      %v306 = vld [vmem:[%s251 + $0x108] sm:$0xff]
      %v307 = vld [vmem:[%s251 + $0x110] sm:$0xff]
      %v308 = vld [vmem:[%s251 + $0x118] sm:$0xff]
      %v309 = vld [vmem:[%s251 + $0x120] sm:$0xff]
      %v310 = vld [vmem:[%s251 + $0x128] sm:$0xff]
      %v311 = vld [vmem:[%s251 + $0x130] sm:$0xff]
      %v312 = vld [vmem:[%s251 + $0x138] sm:$0xff]
      %v313 = vld [vmem:[%s251 + $0x140] sm:$0xff]
      %v314 = vld [vmem:[%s251 + $0x148] sm:$0xff]
      %v315 = vld [vmem:[%s251 + $0x150] sm:$0xff]
      %v316 = vld [vmem:[%s251 + $0x158] sm:$0xff]
      %v317 = vld [vmem:[%s251 + $0x160] sm:$0xff]
      %v318 = vld [vmem:[%s251 + $0x168] sm:$0xff]
      %v319 = vld [vmem:[%s251 + $0x170] sm:$0xff]
      %v320 = vld [vmem:[%s251 + $0x178] sm:$0xff]
      %v321 = vld [vmem:[%s251 + $0x180] sm:$0xff]
      %v322 = vld [vmem:[%s251 + $0x188] sm:$0xff]
      %v323 = vld [vmem:[%s251 + $0x190] sm:$0xff]
      %v324 = vld [vmem:[%s251 + $0x198] sm:$0xff]
      %v325 = vld [vmem:[%s251 + $0x1a0] sm:$0xff]
      %v326 = vld [vmem:[%s251 + $0x1a8] sm:$0xff]
      %v327 = vld [vmem:[%s261] sm:$0xff]
      %v328 = vld [vmem:[%s261 + $0x8] sm:$0xff]
      %v329 = vld [vmem:[%s2] sm:$0xff]
      %v330 = vld [vmem:[%s2 + $0x8] sm:$0xff]
      %v331 = vld [vmem:[%s2 + $0x10] sm:$0xff]
      %v332 = vld [vmem:[%s2 + $0x18] sm:$0xff]
      %v333 = vld [vmem:[%s2 + $0x20] sm:$0xff]
      %v334 = vld [vmem:[%s2 + $0x28] sm:$0xff]
      %v335 = vld [vmem:[%s2 + $0x30] sm:$0xff]
      %v336 = vld [vmem:[%s2 + $0x38] sm:$0xff]
      %v337 = vld [vmem:[%s2 + $0x40] sm:$0xff]
      %v338 = vld [vmem:[%s3] sm:$0xff]
      %v339 = vld [vmem:[%s3 + $0x8] sm:$0xff]
      %v340 = vld [vmem:[%s3 + $0x10] sm:$0xff]
      %vm341 = vcmask 588800
      %v343 = vsel %vm341, %v329, 0
      %v346 = vsel %vm341, %v330, 0
      %v349 = vsel %vm341, %v331, 0
      %351 = vmatprep.subr.mxu0 0.0
      %352 = vmatpush1.msra.mxu0 0.0
      %353 = vmatprep.subr.mxu0 0.0
      %354 = vmatpush1.msra.mxu0 0.0
      %355 = vmatprep.subr.mxu0 0.0
      %356 = vmatpush1.msra.mxu0 0.0
      %357 = vmatprep.subr.mxu0 0.0
      %358 = vmatpush1.msra.mxu0 0.0
      %359 = vmatprep.subr.mxu0 0.0
      %360 = vmatpush1.msra.mxu0 0.0
      %361 = vmatprep.subr.mxu0 0.0
      %362 = vmatpush1.msra.mxu0 0.0
      %363 = vmatprep.subr.mxu0 0.0
      %364 = vmatpush1.msra.mxu0 0.0
      %365 = vmatprep.subr.mxu0 %v290
      %366 = vmatpush1.msra.mxu0 %v289
      %367 = vmatprep.subr.mxu0 %v288
      %368 = vmatpush1.msra.mxu0 %v287
      %369 = vmatprep.subr.mxu0 %v286
      %370 = vmatpush1.msra.mxu0 %v285
      %371 = vmatprep.subr.mxu0 %v284
      %372 = vmatpush1.msra.mxu0 %v283
      %373 = vmatprep.subr.mxu0 %v282
      %374 = vmatpush1.msra.mxu0 %v281
      %375 = vmatprep.subr.mxu0 %v280
      %376 = vmatpush1.msra.mxu0 %v279
      %377 = vmatprep.subr.mxu0 %v278
      %378 = vmatpush1.msra.mxu0 %v277
      %379 = vmatprep.subr.mxu0 %v276
      %380 = vmatpush1.msra.mxu0 %v275
      %381 = vmatprep.subr.mxu0 %v274
      %382 = vmatpush1.msra.mxu0 %v273
      %383 = vmatprep.subr.mxu0 0.0
      %384 = vmatpush2.msra.mxu0 0.0
      %385 = vmatprep.subr.mxu0 0.0
      %386 = vmatpush2.msra.mxu0 0.0
      %387 = vmatprep.subr.mxu0 0.0
      %388 = vmatpush2.msra.mxu0 0.0
      %389 = vmatprep.subr.mxu0 0.0
      %390 = vmatpush2.msra.mxu0 0.0
      %391 = vmatprep.subr.mxu0 0.0
      %392 = vmatpush2.msra.mxu0 0.0
      %393 = vmatprep.subr.mxu0 0.0
      %394 = vmatpush2.msra.mxu0 0.0
      %395 = vmatprep.subr.mxu0 0.0
      %396 = vmatpush2.msra.mxu0 0.0
      %397 = vmatprep.subr.mxu0 0.0
      %398 = vmatpush2.msra.mxu0 0.0
      %399 = vmatprep.subr.mxu0 0.0
      %400 = vmatpush2.msra.mxu0 0.0
      %401 = vmatprep.subr.mxu0 0.0
      %402 = vmatpush2.msra.mxu0 0.0
      %403 = vmatprep.subr.mxu0 0.0
      %404 = vmatpush2.msra.mxu0 0.0
      %405 = vmatprep.subr.mxu0 0.0
      %406 = vmatpush2.msra.mxu0 0.0
      %407 = vmatprep.subr.mxu0 0.0
      %408 = vmatpush2.msra.mxu0 0.0
      %409 = vmatprep.subr.mxu0 0.0
      %410 = vmatpush2.msra.mxu0 0.0
      %411 = vmatprep.subr.mxu0 0.0
      %412 = vmatpush2.msra.mxu0 0.0
      %413 = vmatprep.subr.mxu0 0.0
      %414 = vmatpush2.msra.mxu0 0.0
      %415 = vmatprep.mubr.f32.mxu0 0.0
      %416 = vmatmul.mubr.f32.gmra.mxu0 %v343
      %v417 = vpop.f32.mrf.mxu0
      %v418 = vadd.f32 0.0, %v417
      %v419 = vpop.f32.mrf.mxu0
      %v420 = vadd.f32 0.0, %v419
      %421 = vmatprep.mubr.f32.mxu0 0.0
      %422 = vmatmul.mubr.f32.gmra.mxu0 %v346
      %v423 = vpop.f32.mrf.mxu0
      %v424 = vadd.f32 0.0, %v423
      %v425 = vpop.f32.mrf.mxu0
      %v426 = vadd.f32 0.0, %v425
      %427 = vmatprep.mubr.f32.mxu0 0.0
      %428 = vmatmul.mubr.f32.gmra.mxu0 %v349
      %v429 = vpop.f32.mrf.mxu0
      %v430 = vadd.f32 0.0, %v429
      %v431 = vpop.f32.mrf.mxu0
      %v432 = vadd.f32 0.0, %v431
      %433 = vdwg.mxu0
      %vm434 = vcmp.gt.f32.partialorder %v418, 0.0
      %vm435 = vcmp.gt.f32.partialorder %v420, 0.0
      %vm436 = vcmp.gt.f32.partialorder %v424, 0.0
      %vm437 = vcmp.gt.f32.partialorder %v426, 0.0
      %vm438 = vcmp.gt.f32.partialorder %v430, 0.0
      %vm439 = vcmp.gt.f32.partialorder %v432, 0.0
      %v440 = vmul.f32 %v418, 0.1
      %v441 = vmul.f32 %v420, 0.1
      %v442 = vmul.f32 %v424, 0.1
      %v443 = vmul.f32 %v426, 0.1
      %v444 = vmul.f32 %v430, 0.1
      %v445 = vmul.f32 %v432, 0.1
      %v446 = vsel %vm434, %v418, %v440
      %v447 = vsel %vm435, %v420, %v441
      %v448 = vsel %vm436, %v424, %v442
      %v449 = vsel %vm437, %v426, %v443
      %v450 = vsel %vm438, %v430, %v444
      %v451 = vsel %vm439, %v432, %v445
      %vm452 = vcmask 195584
      %v454 = vsel %vm452, %v338, 0
      %456 = vmatprep.subr.mxu0 0.0
      %457 = vmatpush1.msra.mxu0 0.0
      %458 = vmatprep.subr.mxu0 0.0
      %459 = vmatpush1.msra.mxu0 0.0
      %460 = vmatprep.subr.mxu0 0.0
      %461 = vmatpush1.msra.mxu0 0.0
      %462 = vmatprep.subr.mxu0 0.0
      %463 = vmatpush1.msra.mxu0 0.0
      %464 = vmatprep.subr.mxu0 0.0
      %465 = vmatpush1.msra.mxu0 0.0
      %466 = vmatprep.subr.mxu0 0.0
      %467 = vmatpush1.msra.mxu0 0.0
      %468 = vmatprep.subr.mxu0 0.0
      %469 = vmatpush1.msra.mxu0 0.0
      %470 = vmatprep.subr.mxu0 0.0
      %471 = vmatpush1.msra.mxu0 0.0
      %472 = vmatprep.subr.mxu0 0.0
      %473 = vmatpush1.msra.mxu0 0.0
      %474 = vmatprep.subr.mxu0 0.0
      %475 = vmatpush1.msra.mxu0 0.0
      %476 = vmatprep.subr.mxu0 0.0
      %477 = vmatpush1.msra.mxu0 0.0
      %478 = vmatprep.subr.mxu0 0.0
      %479 = vmatpush1.msra.mxu0 0.0
      %480 = vmatprep.subr.mxu0 0.0
      %481 = vmatpush1.msra.mxu0 0.0
      %482 = vmatprep.subr.mxu0 %v451
      %483 = vmatpush1.msra.mxu0 %v450
      %484 = vmatprep.subr.mxu0 %v449
      %485 = vmatpush1.msra.mxu0 %v448
      %486 = vmatprep.subr.mxu0 %v447
      %487 = vmatpush1.msra.mxu0 %v446
      %488 = vmatprep.subr.mxu0 0.0
      %489 = vmatpush2.msra.mxu0 0.0
      %490 = vmatprep.subr.mxu0 0.0
      %491 = vmatpush2.msra.mxu0 0.0
      %492 = vmatprep.subr.mxu0 0.0
      %493 = vmatpush2.msra.mxu0 0.0
      %494 = vmatprep.subr.mxu0 0.0
      %495 = vmatpush2.msra.mxu0 0.0
      %496 = vmatprep.subr.mxu0 0.0
      %497 = vmatpush2.msra.mxu0 0.0
      %498 = vmatprep.subr.mxu0 0.0
      %499 = vmatpush2.msra.mxu0 0.0
      %500 = vmatprep.subr.mxu0 0.0
      %501 = vmatpush2.msra.mxu0 0.0
      %502 = vmatprep.subr.mxu0 0.0
      %503 = vmatpush2.msra.mxu0 0.0
      %504 = vmatprep.subr.mxu0 0.0
      %505 = vmatpush2.msra.mxu0 0.0
      %506 = vmatprep.subr.mxu0 0.0
      %507 = vmatpush2.msra.mxu0 0.0
      %508 = vmatprep.subr.mxu0 0.0
      %509 = vmatpush2.msra.mxu0 0.0
      %510 = vmatprep.subr.mxu0 0.0
      %511 = vmatpush2.msra.mxu0 0.0
      %512 = vmatprep.subr.mxu0 0.0
      %513 = vmatpush2.msra.mxu0 0.0
      %514 = vmatprep.subr.mxu0 0.0
      %515 = vmatpush2.msra.mxu0 0.0
      %516 = vmatprep.subr.mxu0 0.0
      %517 = vmatpush2.msra.mxu0 0.0
      %518 = vmatprep.subr.mxu0 0.0
      %519 = vmatpush2.msra.mxu0 0.0
      %520 = vmatprep.mubr.f32.mxu0 0.0
      %521 = vmatmul.mubr.f32.gmra.mxu0 %v454
      %v522 = vpop.f32.mrf.mxu0
      %v523 = vadd.f32 0.0, %v522
      %v524 = vpop.f32.mrf.mxu0
      %v525 = vadd.f32 0.0, %v524
      %526 = vdwg.mxu0
      %v527 = vadd.f32 %v327, %v523
      %v528 = vadd.f32 %v328, %v525
      %v530 = vsel %vm341, %v332, 0
      %v533 = vsel %vm341, %v333, 0
      %v536 = vsel %vm341, %v334, 0
      %538 = vmatprep.subr.mxu0 0.0
      %539 = vmatpush1.msra.mxu0 0.0
      %540 = vmatprep.subr.mxu0 0.0
      %541 = vmatpush1.msra.mxu0 0.0
      %542 = vmatprep.subr.mxu0 0.0
      %543 = vmatpush1.msra.mxu0 0.0
      %544 = vmatprep.subr.mxu0 0.0
      %545 = vmatpush1.msra.mxu0 0.0
      %546 = vmatprep.subr.mxu0 0.0
      %547 = vmatpush1.msra.mxu0 0.0
      %548 = vmatprep.subr.mxu0 0.0
      %549 = vmatpush1.msra.mxu0 0.0
      %550 = vmatprep.subr.mxu0 0.0
      %551 = vmatpush1.msra.mxu0 0.0
      %552 = vmatprep.subr.mxu0 %v308
      %553 = vmatpush1.msra.mxu0 %v307
      %554 = vmatprep.subr.mxu0 %v306
      %555 = vmatpush1.msra.mxu0 %v305
      %556 = vmatprep.subr.mxu0 %v304
      %557 = vmatpush1.msra.mxu0 %v303
      %558 = vmatprep.subr.mxu0 %v302
      %559 = vmatpush1.msra.mxu0 %v301
      %560 = vmatprep.subr.mxu0 %v300
      %561 = vmatpush1.msra.mxu0 %v299
      %562 = vmatprep.subr.mxu0 %v298
      %563 = vmatpush1.msra.mxu0 %v297
      %564 = vmatprep.subr.mxu0 %v296
      %565 = vmatpush1.msra.mxu0 %v295
      %566 = vmatprep.subr.mxu0 %v294
      %567 = vmatpush1.msra.mxu0 %v293
      %568 = vmatprep.subr.mxu0 %v292
      %569 = vmatpush1.msra.mxu0 %v291
      %570 = vmatprep.subr.mxu0 0.0
      %571 = vmatpush2.msra.mxu0 0.0
      %572 = vmatprep.subr.mxu0 0.0
      %573 = vmatpush2.msra.mxu0 0.0
      %574 = vmatprep.subr.mxu0 0.0
      %575 = vmatpush2.msra.mxu0 0.0
      %576 = vmatprep.subr.mxu0 0.0
      %577 = vmatpush2.msra.mxu0 0.0
      %578 = vmatprep.subr.mxu0 0.0
      %579 = vmatpush2.msra.mxu0 0.0
      %580 = vmatprep.subr.mxu0 0.0
      %581 = vmatpush2.msra.mxu0 0.0
      %582 = vmatprep.subr.mxu0 0.0
      %583 = vmatpush2.msra.mxu0 0.0
      %584 = vmatprep.subr.mxu0 0.0
      %585 = vmatpush2.msra.mxu0 0.0
      %586 = vmatprep.subr.mxu0 0.0
      %587 = vmatpush2.msra.mxu0 0.0
      %588 = vmatprep.subr.mxu0 0.0
      %589 = vmatpush2.msra.mxu0 0.0
      %590 = vmatprep.subr.mxu0 0.0
      %591 = vmatpush2.msra.mxu0 0.0
      %592 = vmatprep.subr.mxu0 0.0
      %593 = vmatpush2.msra.mxu0 0.0
      %594 = vmatprep.subr.mxu0 0.0
      %595 = vmatpush2.msra.mxu0 0.0
      %596 = vmatprep.subr.mxu0 0.0
      %597 = vmatpush2.msra.mxu0 0.0
      %598 = vmatprep.subr.mxu0 0.0
      %599 = vmatpush2.msra.mxu0 0.0
      %600 = vmatprep.subr.mxu0 0.0
      %601 = vmatpush2.msra.mxu0 0.0
      %602 = vmatprep.mubr.f32.mxu0 0.0
      %603 = vmatmul.mubr.f32.gmra.mxu0 %v530
      %v604 = vpop.f32.mrf.mxu0
      %v605 = vadd.f32 0.0, %v604
      %v606 = vpop.f32.mrf.mxu0
      %v607 = vadd.f32 0.0, %v606
      %608 = vmatprep.mubr.f32.mxu0 0.0
      %609 = vmatmul.mubr.f32.gmra.mxu0 %v533
      %v610 = vpop.f32.mrf.mxu0
      %v611 = vadd.f32 0.0, %v610
      %v612 = vpop.f32.mrf.mxu0
      %v613 = vadd.f32 0.0, %v612
      %614 = vmatprep.mubr.f32.mxu0 0.0
      %615 = vmatmul.mubr.f32.gmra.mxu0 %v536
      %v616 = vpop.f32.mrf.mxu0
      %v617 = vadd.f32 0.0, %v616
      %v618 = vpop.f32.mrf.mxu0
      %v619 = vadd.f32 0.0, %v618
      %620 = vdwg.mxu0
      %vm621 = vcmp.gt.f32.partialorder %v605, 0.0
      %vm622 = vcmp.gt.f32.partialorder %v607, 0.0
      %vm623 = vcmp.gt.f32.partialorder %v611, 0.0
      %vm624 = vcmp.gt.f32.partialorder %v613, 0.0
      %vm625 = vcmp.gt.f32.partialorder %v617, 0.0
      %vm626 = vcmp.gt.f32.partialorder %v619, 0.0
      %v627 = vmul.f32 %v605, 0.1
      %v628 = vmul.f32 %v607, 0.1
      %v629 = vmul.f32 %v611, 0.1
      %v630 = vmul.f32 %v613, 0.1
      %v631 = vmul.f32 %v617, 0.1
      %v632 = vmul.f32 %v619, 0.1
      %v633 = vsel %vm621, %v605, %v627
      %v634 = vsel %vm622, %v607, %v628
      %v635 = vsel %vm623, %v611, %v629
      %v636 = vsel %vm624, %v613, %v630
      %v637 = vsel %vm625, %v617, %v631
      %v638 = vsel %vm626, %v619, %v632
      %v640 = vsel %vm452, %v339, 0
      %642 = vmatprep.subr.mxu0 0.0
      %643 = vmatpush1.msra.mxu0 0.0
      %644 = vmatprep.subr.mxu0 0.0
      %645 = vmatpush1.msra.mxu0 0.0
      %646 = vmatprep.subr.mxu0 0.0
      %647 = vmatpush1.msra.mxu0 0.0
      %648 = vmatprep.subr.mxu0 0.0
      %649 = vmatpush1.msra.mxu0 0.0
      %650 = vmatprep.subr.mxu0 0.0
      %651 = vmatpush1.msra.mxu0 0.0
      %652 = vmatprep.subr.mxu0 0.0
      %653 = vmatpush1.msra.mxu0 0.0
      %654 = vmatprep.subr.mxu0 0.0
      %655 = vmatpush1.msra.mxu0 0.0
      %656 = vmatprep.subr.mxu0 0.0
      %657 = vmatpush1.msra.mxu0 0.0
      %658 = vmatprep.subr.mxu0 0.0
      %659 = vmatpush1.msra.mxu0 0.0
      %660 = vmatprep.subr.mxu0 0.0
      %661 = vmatpush1.msra.mxu0 0.0
      %662 = vmatprep.subr.mxu0 0.0
      %663 = vmatpush1.msra.mxu0 0.0
      %664 = vmatprep.subr.mxu0 0.0
      %665 = vmatpush1.msra.mxu0 0.0
      %666 = vmatprep.subr.mxu0 0.0
      %667 = vmatpush1.msra.mxu0 0.0
      %668 = vmatprep.subr.mxu0 %v638
      %669 = vmatpush1.msra.mxu0 %v637
      %670 = vmatprep.subr.mxu0 %v636
      %671 = vmatpush1.msra.mxu0 %v635
      %672 = vmatprep.subr.mxu0 %v634
      %673 = vmatpush1.msra.mxu0 %v633
      %674 = vmatprep.subr.mxu0 0.0
      %675 = vmatpush2.msra.mxu0 0.0
      %676 = vmatprep.subr.mxu0 0.0
      %677 = vmatpush2.msra.mxu0 0.0
      %678 = vmatprep.subr.mxu0 0.0
      %679 = vmatpush2.msra.mxu0 0.0
      %680 = vmatprep.subr.mxu0 0.0
      %681 = vmatpush2.msra.mxu0 0.0
      %682 = vmatprep.subr.mxu0 0.0
      %683 = vmatpush2.msra.mxu0 0.0
      %684 = vmatprep.subr.mxu0 0.0
      %685 = vmatpush2.msra.mxu0 0.0
      %686 = vmatprep.subr.mxu0 0.0
      %687 = vmatpush2.msra.mxu0 0.0
      %688 = vmatprep.subr.mxu0 0.0
      %689 = vmatpush2.msra.mxu0 0.0
      %690 = vmatprep.subr.mxu0 0.0
      %691 = vmatpush2.msra.mxu0 0.0
      %692 = vmatprep.subr.mxu0 0.0
      %693 = vmatpush2.msra.mxu0 0.0
      %694 = vmatprep.subr.mxu0 0.0
      %695 = vmatpush2.msra.mxu0 0.0
      %696 = vmatprep.subr.mxu0 0.0
      %697 = vmatpush2.msra.mxu0 0.0
      %698 = vmatprep.subr.mxu0 0.0
      %699 = vmatpush2.msra.mxu0 0.0
      %700 = vmatprep.subr.mxu0 0.0
      %701 = vmatpush2.msra.mxu0 0.0
      %702 = vmatprep.subr.mxu0 0.0
      %703 = vmatpush2.msra.mxu0 0.0
      %704 = vmatprep.subr.mxu0 0.0
      %705 = vmatpush2.msra.mxu0 0.0
      %706 = vmatprep.mubr.f32.mxu0 0.0
      %707 = vmatmul.mubr.f32.gmra.mxu0 %v640
      %v708 = vpop.f32.mrf.mxu0
      %v709 = vadd.f32 0.0, %v708
      %v710 = vpop.f32.mrf.mxu0
      %v711 = vadd.f32 0.0, %v710
      %712 = vdwg.mxu0
      %v713 = vadd.f32 %v527, %v709
      %v714 = vadd.f32 %v528, %v711
      %v716 = vsel %vm341, %v335, 0
      %v719 = vsel %vm341, %v336, 0
      %v722 = vsel %vm341, %v337, 0
      %724 = vmatprep.subr.mxu0 0.0
      %725 = vmatpush1.msra.mxu0 0.0
      %726 = vmatprep.subr.mxu0 0.0
      %727 = vmatpush1.msra.mxu0 0.0
      %728 = vmatprep.subr.mxu0 0.0
      %729 = vmatpush1.msra.mxu0 0.0
      %730 = vmatprep.subr.mxu0 0.0
      %731 = vmatpush1.msra.mxu0 0.0
      %732 = vmatprep.subr.mxu0 0.0
      %733 = vmatpush1.msra.mxu0 0.0
      %734 = vmatprep.subr.mxu0 0.0
      %735 = vmatpush1.msra.mxu0 0.0
      %736 = vmatprep.subr.mxu0 0.0
      %737 = vmatpush1.msra.mxu0 0.0
      %738 = vmatprep.subr.mxu0 %v326
      %739 = vmatpush1.msra.mxu0 %v325
      %740 = vmatprep.subr.mxu0 %v324
      %741 = vmatpush1.msra.mxu0 %v323
      %742 = vmatprep.subr.mxu0 %v322
      %743 = vmatpush1.msra.mxu0 %v321
      %744 = vmatprep.subr.mxu0 %v320
      %745 = vmatpush1.msra.mxu0 %v319
      %746 = vmatprep.subr.mxu0 %v318
      %747 = vmatpush1.msra.mxu0 %v317
      %748 = vmatprep.subr.mxu0 %v316
      %749 = vmatpush1.msra.mxu0 %v315
      %750 = vmatprep.subr.mxu0 %v314
      %751 = vmatpush1.msra.mxu0 %v313
      %752 = vmatprep.subr.mxu0 %v312
      %753 = vmatpush1.msra.mxu0 %v311
      %754 = vmatprep.subr.mxu0 %v310
      %755 = vmatpush1.msra.mxu0 %v309
      %756 = vmatprep.subr.mxu0 0.0
      %757 = vmatpush2.msra.mxu0 0.0
      %758 = vmatprep.subr.mxu0 0.0
      %759 = vmatpush2.msra.mxu0 0.0
      %760 = vmatprep.subr.mxu0 0.0
      %761 = vmatpush2.msra.mxu0 0.0
      %762 = vmatprep.subr.mxu0 0.0
      %763 = vmatpush2.msra.mxu0 0.0
      %764 = vmatprep.subr.mxu0 0.0
      %765 = vmatpush2.msra.mxu0 0.0
      %766 = vmatprep.subr.mxu0 0.0
      %767 = vmatpush2.msra.mxu0 0.0
      %768 = vmatprep.subr.mxu0 0.0
      %769 = vmatpush2.msra.mxu0 0.0
      %770 = vmatprep.subr.mxu0 0.0
      %771 = vmatpush2.msra.mxu0 0.0
      %772 = vmatprep.subr.mxu0 0.0
      %773 = vmatpush2.msra.mxu0 0.0
      %774 = vmatprep.subr.mxu0 0.0
      %775 = vmatpush2.msra.mxu0 0.0
      %776 = vmatprep.subr.mxu0 0.0
      %777 = vmatpush2.msra.mxu0 0.0
      %778 = vmatprep.subr.mxu0 0.0
      %779 = vmatpush2.msra.mxu0 0.0
      %780 = vmatprep.subr.mxu0 0.0
      %781 = vmatpush2.msra.mxu0 0.0
      %782 = vmatprep.subr.mxu0 0.0
      %783 = vmatpush2.msra.mxu0 0.0
      %784 = vmatprep.subr.mxu0 0.0
      %785 = vmatpush2.msra.mxu0 0.0
      %786 = vmatprep.subr.mxu0 0.0
      %787 = vmatpush2.msra.mxu0 0.0
      %788 = vmatprep.mubr.f32.mxu0 0.0
      %789 = vmatmul.mubr.f32.gmra.mxu0 %v716
      %v790 = vpop.f32.mrf.mxu0
      %v791 = vadd.f32 0.0, %v790
      %v792 = vpop.f32.mrf.mxu0
      %v793 = vadd.f32 0.0, %v792
      %794 = vmatprep.mubr.f32.mxu0 0.0
      %795 = vmatmul.mubr.f32.gmra.mxu0 %v719
      %v796 = vpop.f32.mrf.mxu0
      %v797 = vadd.f32 0.0, %v796
      %v798 = vpop.f32.mrf.mxu0
      %v799 = vadd.f32 0.0, %v798
      %800 = vmatprep.mubr.f32.mxu0 0.0
      %801 = vmatmul.mubr.f32.gmra.mxu0 %v722
      %v802 = vpop.f32.mrf.mxu0
      %v803 = vadd.f32 0.0, %v802
      %v804 = vpop.f32.mrf.mxu0
      %v805 = vadd.f32 0.0, %v804
      %806 = vdwg.mxu0
      %vm807 = vcmp.gt.f32.partialorder %v791, 0.0
      %vm808 = vcmp.gt.f32.partialorder %v793, 0.0
      %vm809 = vcmp.gt.f32.partialorder %v797, 0.0
      %vm810 = vcmp.gt.f32.partialorder %v799, 0.0
      %vm811 = vcmp.gt.f32.partialorder %v803, 0.0
      %vm812 = vcmp.gt.f32.partialorder %v805, 0.0
      %v813 = vmul.f32 %v791, 0.1
      %v814 = vmul.f32 %v793, 0.1
      %v815 = vmul.f32 %v797, 0.1
      %v816 = vmul.f32 %v799, 0.1
      %v817 = vmul.f32 %v803, 0.1
      %v818 = vmul.f32 %v805, 0.1
      %v819 = vsel %vm807, %v791, %v813
      %v820 = vsel %vm808, %v793, %v814
      %v821 = vsel %vm809, %v797, %v815
      %v822 = vsel %vm810, %v799, %v816
      %v823 = vsel %vm811, %v803, %v817
      %v824 = vsel %vm812, %v805, %v818
      %v826 = vsel %vm452, %v340, 0
      %828 = vmatprep.subr.mxu0 0.0
      %829 = vmatpush1.msra.mxu0 0.0
      %830 = vmatprep.subr.mxu0 0.0
      %831 = vmatpush1.msra.mxu0 0.0
      %832 = vmatprep.subr.mxu0 0.0
      %833 = vmatpush1.msra.mxu0 0.0
      %834 = vmatprep.subr.mxu0 0.0
      %835 = vmatpush1.msra.mxu0 0.0
      %836 = vmatprep.subr.mxu0 0.0
      %837 = vmatpush1.msra.mxu0 0.0
      %838 = vmatprep.subr.mxu0 0.0
      %839 = vmatpush1.msra.mxu0 0.0
      %840 = vmatprep.subr.mxu0 0.0
      %841 = vmatpush1.msra.mxu0 0.0
      %842 = vmatprep.subr.mxu0 0.0
      %843 = vmatpush1.msra.mxu0 0.0
      %844 = vmatprep.subr.mxu0 0.0
      %845 = vmatpush1.msra.mxu0 0.0
      %846 = vmatprep.subr.mxu0 0.0
      %847 = vmatpush1.msra.mxu0 0.0
      %848 = vmatprep.subr.mxu0 0.0
      %849 = vmatpush1.msra.mxu0 0.0
      %850 = vmatprep.subr.mxu0 0.0
      %851 = vmatpush1.msra.mxu0 0.0
      %852 = vmatprep.subr.mxu0 0.0
      %853 = vmatpush1.msra.mxu0 0.0
      %854 = vmatprep.subr.mxu0 %v824
      %855 = vmatpush1.msra.mxu0 %v823
      %856 = vmatprep.subr.mxu0 %v822
      %857 = vmatpush1.msra.mxu0 %v821
      %858 = vmatprep.subr.mxu0 %v820
      %859 = vmatpush1.msra.mxu0 %v819
      %860 = vmatprep.subr.mxu0 0.0
      %861 = vmatpush2.msra.mxu0 0.0
      %862 = vmatprep.subr.mxu0 0.0
      %863 = vmatpush2.msra.mxu0 0.0
      %864 = vmatprep.subr.mxu0 0.0
      %865 = vmatpush2.msra.mxu0 0.0
      %866 = vmatprep.subr.mxu0 0.0
      %867 = vmatpush2.msra.mxu0 0.0
      %868 = vmatprep.subr.mxu0 0.0
      %869 = vmatpush2.msra.mxu0 0.0
      %870 = vmatprep.subr.mxu0 0.0
      %871 = vmatpush2.msra.mxu0 0.0
      %872 = vmatprep.subr.mxu0 0.0
      %873 = vmatpush2.msra.mxu0 0.0
      %874 = vmatprep.subr.mxu0 0.0
      %875 = vmatpush2.msra.mxu0 0.0
      %876 = vmatprep.subr.mxu0 0.0
      %877 = vmatpush2.msra.mxu0 0.0
      %878 = vmatprep.subr.mxu0 0.0
      %879 = vmatpush2.msra.mxu0 0.0
      %880 = vmatprep.subr.mxu0 0.0
      %881 = vmatpush2.msra.mxu0 0.0
      %882 = vmatprep.subr.mxu0 0.0
      %883 = vmatpush2.msra.mxu0 0.0
      %884 = vmatprep.subr.mxu0 0.0
      %885 = vmatpush2.msra.mxu0 0.0
      %886 = vmatprep.subr.mxu0 0.0
      %887 = vmatpush2.msra.mxu0 0.0
      %888 = vmatprep.subr.mxu0 0.0
      %889 = vmatpush2.msra.mxu0 0.0
      %890 = vmatprep.subr.mxu0 0.0
      %891 = vmatpush2.msra.mxu0 0.0
      %892 = vmatprep.mubr.f32.mxu0 0.0
      %893 = vmatmul.mubr.f32.gmra.mxu0 %v826
      %v894 = vpop.f32.mrf.mxu0
      %v895 = vadd.f32 0.0, %v894
      %v896 = vpop.f32.mrf.mxu0
      %v897 = vadd.f32 0.0, %v896
      %898 = vdwg.mxu0
      %v899 = vadd.f32 %v713, %v895
      %v900 = vadd.f32 %v714, %v897
      %901 = vst [vmem:[%s271] sm:$0xff] %v899
      %902 = vst [vmem:[%s271 + $0x8] sm:$0xff] %v900
      %s903 = smul.u32 2, %s20
      %p904 = scmp.lt.s32.totalorder %s19, 1
      %s905 = scalar_select %p904, %s19, 1
      %p906 = scmp.lt.s32.totalorder %s903, 1
      %s907 = scalar_select %p906, %s903, 1
      %s908 = smul.addr %s905, 2
      %s909 = sadd.s32 %s907, %s908
      %s910 = smul.addr %s909, 8
      %s911 = scalar_lea.vmem %s4, %s910
      // Predicated region
      $region37: #{racp_block_1.1} parent=35 // pred_check
        %p912 = pneg %p145
      $region38: #{racp_block_1.1} parent=35 // pred_check_branch
        %914 = sbr.rel (%p912) target = $region40
      $region39: #{racp_block_1.1} parent=35 // pred_region
        %s915 = smul.u32 2, %s20
      $region40: #{racp_block_1.1} parent=35 // pred_fallthru
        _
    $region36: #{racp_block_1.1} parent=5 // pred_fallthru
      _
    %p916 = scmp.le.s32.totalorder 2, %s10
    // Predicated region
    $region41: #{racp_block_1.1} parent=5 // pred_check
      %p917 = pneg %p916
    $region42: #{racp_block_1.1} parent=5 // pred_check_branch
      %919 = sbr.rel (%p917) target = $region44
    $region43: #{racp_block_1.1} parent=5 // pred_region
      %s920 = ssub.s32 %s10, 2
      // Predicated region
      $region45: #{racp_block_1.1} parent=43 // pred_check
        %p921 = pneg %p151
      $region46: #{racp_block_1.1} parent=43 // pred_check_branch
        %923 = sbr.rel (%p921) target = $region48
      $region47: #{racp_block_1.1} parent=43 // pred_region
        %s924 = smul.u32 2, %s22
        %p925 = scmp.lt.s32.totalorder %s21, 1
        %s926 = scalar_select %p925, %s21, 1
        %p927 = scmp.lt.s32.totalorder %s924, 1
        %s928 = scalar_select %p927, %s924, 1
        %s929 = smul.addr %s926, 2
        %s930 = sadd.s32 %s928, %s929
        %s931 = smul.addr %s930, 8
        %s932 = scalar_lea.vmem %s4, %s931
      $region48: #{racp_block_1.1} parent=43 // pred_fallthru
        _
    $region44: #{racp_block_1.1} parent=5 // pred_fallthru
      _
  $region6: #{racp_block_1.1} parent=0 // loop_footer
    %s14 = sadd.s32 1, %s10
  $region7: #{racp_block_1.1} parent=0 // loop_footer_branch
    %9 = sbr.rel target = $region3
  $region8: #{racp_block_1.1} parent=0 // loop_exit
    _

</llo_original>
